<compile_context>
chip_gen: v7x
topology: tpu7x:2x2x1
jax: 0.10.0
libtpu: 0.0.40
codegen_flags: <defaults>
</compile_context>

<pallas_src>
import functools

import jax
import jax.numpy as jnp
from jax.experimental import pallas as pl
from jax.experimental.pallas import tpu as pltpu

LAMADA = 0.001
LEAKY_SLOPE = 0.1

# VMEM budget (bytes) for the double-buffered in+out blocks of the MLP kernel.
# Kept conservative so derived tiles also fit v7x's 64 MiB physical VMEM.
_VMEM_BLOCK_BUDGET = 20 << 20


def _round_up(x, m):
    return ((x + m - 1) // m) * m


def _cdiv(a, b):
    return -(-a // b)


# ---------------------------------------------------------------------------
# Kernel 1: shared filter MLP, transposed / lane-dense.
#   y^T = lrelu(W2^T @ lrelu(W1^T @ x^T + b1) + b2), blocks (F, TILE_N).
# ---------------------------------------------------------------------------
def _filter_kernel_t(x_ref, w1_ref, b1_ref, w2_ref, b2_ref, o_ref):
    x = x_ref[...]                                                 # (F, T)
    h = jnp.dot(w1_ref[...], x, preferred_element_type=jnp.float32)
    h = h + b1_ref[...]                                            # (H, T)
    h = jnp.where(h > 0, h, LEAKY_SLOPE * h)
    h = h.astype(w2_ref.dtype)
    y = jnp.dot(w2_ref[...], h, preferred_element_type=jnp.float32)
    y = y + b2_ref[...]                                            # (F, T)
    y = jnp.where(y > 0, y, LEAKY_SLOPE * y)
    o_ref[...] = y.astype(o_ref.dtype)


def _derive_tile_n(f, dtype_bytes, requested):
    """Largest lane-tile (multiple of 128) whose double-buffered in+out blocks
    fit the VMEM budget."""
    per_col = 4 * f * dtype_bytes                 # 2 bufs x (in + out)
    max_tile = max(128, (_VMEM_BLOCK_BUDGET // per_col) // 128 * 128)
    return int(max(128, min(requested, max_tile)))


def filter_mlp_t(x_t, w1t, b1, w2t, b2, *, tile_n=4096):
    """Fused 2-layer MLP with LeakyReLU(0.1), transposed (lane-dense) layout.

    x_t: (F, N) -- columns are rows of the original (N, F) input.
    w1t: (H, F), b1: (H,), w2t: (F, H), b2: (F,).  Returns (F, N).
    On v6e/v7x, passing x_t / w1t / w2t as bf16 halves HBM traffic; the
    matmuls still accumulate in f32 (preferred_element_type).
    """
    f, n = x_t.shape
    h = w1t.shape[0]
    dtype_bytes = jnp.dtype(x_t.dtype).itemsize

    tile = _derive_tile_n(f, dtype_bytes, tile_n)
    if n <= tile:
        tile = n                       # single full-extent block, no padding
    grid_n = pl.cdiv(n, tile)          # partial last block handled by Pallas

    weight_bytes = (w1t.size + w2t.size) * jnp.dtype(w1t.dtype).itemsize \
        + (b1.size + b2.size) * 4
    block_bytes = 4 * tile * f * dtype_bytes + 2 * tile * h * 4
    vmem_limit = int(min(max(block_bytes + 2 * weight_bytes + (4 << 20),
                             16 << 20), 48 << 20))

    return pl.pallas_call(
        _filter_kernel_t,
        out_shape=jax.ShapeDtypeStruct((f, n), x_t.dtype),
        grid=(grid_n,),
        in_specs=[
            pl.BlockSpec((f, tile), lambda i: (0, i)),
            pl.BlockSpec((h, f), lambda i: (0, 0)),
            pl.BlockSpec((h, 1), lambda i: (0, 0)),
            pl.BlockSpec((f, h), lambda i: (0, 0)),
            pl.BlockSpec((f, 1), lambda i: (0, 0)),
        ],
        out_specs=pl.BlockSpec((f, tile), lambda i: (0, i)),
        compiler_params=pltpu.CompilerParams(
            dimension_semantics=("parallel",),
            vmem_limit_bytes=vmem_limit),
    )(x_t, w1t, b1.reshape(h, 1), w2t, b2.reshape(f, 1))


# ---------------------------------------------------------------------------
# Kernel 2: rating loss, batched (TB rows / grid step), lane-dense, 2-core.
# ---------------------------------------------------------------------------
def _loss_kernel(u_ref, v_ref, off_ref, out_ref, sq_acc, l2_acc,
                 *, inv_b, l2_scale):
    b = pl.program_id(1)
    nb = pl.num_programs(1)

    @pl.when(b == 0)
    def _init():
        sq_acc[...] = jnp.zeros_like(sq_acc)
        l2_acc[...] = jnp.zeros_like(l2_acc)

    u = u_ref[...]                                        # (F, TB)
    v = v_ref[...]                                        # (F, TB)
    # prediction - rating = <u, v> + (user_bias + item_bias + avg - rating)
    diff = jnp.sum(u * v, axis=0, keepdims=True) + off_ref[...]     # (1, TB)
    sq_acc[...] += jnp.sum(diff * diff, keepdims=True)              # (1, 1)
    l2_acc[...] += jnp.sum(u * u + v * v, axis=1, keepdims=True)    # (F, 1)

    @pl.when(b == nb - 1)
    def _finalize():
        task = sq_acc[...] * inv_b                                  # (1, 1)
        l2 = jnp.sum(l2_acc[...], keepdims=True) * l2_scale         # (1, 1)
        out_ref[:, 0:1] = task + l2
        out_ref[:, 1:2] = task
        out_ref[:, 2:3] = l2


def rating_loss(u_g, v_g, offset, *, tb=512, ncores=2):
    """u_g, v_g: (F, B) gathered (transposed) batch embeddings.
    offset: (B,) = user_bias + item_bias + avg_rating - rating.
    Returns (loss, task_loss, l2_reg) scalars."""
    f, b = u_g.shape

    tb = int(max(128, min(tb, _round_up(_cdiv(b, ncores), 128))))
    b_pad = _round_up(b, ncores * tb)
    if b_pad != b:
        pad = b_pad - b                         # zero rows contribute nothing
        u_g = jnp.pad(u_g, ((0, 0), (0, pad)))
        v_g = jnp.pad(v_g, ((0, 0), (0, pad)))
        offset = jnp.pad(offset, (0, pad))
    off = offset.reshape(1, b_pad)
    nb = b_pad // (ncores * tb)

    kernel = functools.partial(_loss_kernel,
                               inv_b=1.0 / b, l2_scale=LAMADA / (b * f))

    block_bytes = 2 * (2 * f * tb + tb) * 4
    vmem_limit = int(min(max(block_bytes + (4 << 20), 16 << 20), 48 << 20))

    out = pl.pallas_call(
        kernel,
        out_shape=jax.ShapeDtypeStruct((ncores, 3), jnp.float32),
        grid=(ncores, nb),
        in_specs=[
            pl.BlockSpec((f, tb), lambda c, i: (0, c * nb + i)),
            pl.BlockSpec((f, tb), lambda c, i: (0, c * nb + i)),
            pl.BlockSpec((1, tb), lambda c, i: (0, c * nb + i)),
        ],
        out_specs=pl.BlockSpec((1, 3), lambda c, i: (c, 0)),
        scratch_shapes=[
            pltpu.VMEM((1, 1), jnp.float32),    # sum of squared diffs
            pltpu.VMEM((f, 1), jnp.float32),    # partial sum of u^2 + v^2
        ],
        compiler_params=pltpu.CompilerParams(
            dimension_semantics=("parallel", "arbitrary"),
            vmem_limit_bytes=vmem_limit),
    )(u_g, v_g, off)

    # Per-core partial sums use global 1/B scaling -> plain sum is exact.
    loss = jnp.sum(out[:, 0])
    task = jnp.sum(out[:, 1])
    l2 = jnp.sum(out[:, 2])
    return loss, task, l2


# ---------------------------------------------------------------------------
# Full forward (mirrors GCN_compostional.forward with no Disc/Reg modules)
# ---------------------------------------------------------------------------
def gcn_compositional_forward(params, user_item_matrix, item_user_matrix,
                              d_i, d_j, avg_rating, user0, item_i0, ratings):
    users_emb = params["embed_user"]          # (U, F)
    items_emb = params["embed_item"]          # (I, F)

    # --- GCN propagation (glue) ---
    # TODO(synk): torch.sparse.mm has no clean Pallas equivalent; left to XLA
    # as a dense matmul over the (small) adjacency stand-ins.
    g1_u = jax.nn.relu(user_item_matrix @ items_emb + users_emb * d_i)
    g1_i = jax.nn.relu(item_user_matrix @ users_emb + items_emb * d_j)
    g2_u = jax.nn.relu(user_item_matrix @ g1_i + g1_u * d_i)
    g2_i = jax.nn.relu(item_user_matrix @ g1_u + g1_i * d_j)
    gcn_u = users_emb + g1_u + g2_u
    gcn_i = items_emb + g1_i + g2_i
    u_cnt = gcn_u.shape[0]

    # --- shared filter MLP (Pallas, lane-dense transposed layout) ---
    x_t = jnp.concatenate([gcn_u, gcn_i], axis=0).T            # (F, U+I)
    filtered_t = filter_mlp_t(x_t, params["w1"].T, params["b1"],
                              params["w2"].T, params["b2"])     # (F, U+I)
    fu_t = filtered_t[:, :u_cnt]                                 # (F, U)
    fi_t = filtered_t[:, u_cnt:]                                 # (F, I)

    # --- gather the batch (XLA glue) and fold biases into one offset ---
    u_g = jnp.take(fu_t, user0, axis=1)                          # (F, B)
    v_g = jnp.take(fi_t, item_i0, axis=1)                        # (F, B)
    ratings = ratings.astype(jnp.float32)
    offset = (params["user_bias"][user0, 0] + params["item_bias"][item_i0, 0]
              + jnp.float32(avg_rating) - ratings)               # (B,)

    loss, task, _ = rating_loss(u_g, v_g, offset)
    zero = jnp.float32(0.0)
    # TODO(synk): GenDisc / GenReg / AgeDisc / AgeReg penalty modules are not
    # provided; penalties are zero as in the module's default path.
    # (loss, loss2, l_penalty_1, l_penalty_2, l_penalty_3, l_penalty_4)
    return loss, task, zero, zero, zero, zero


if __name__ == "__main__":
    user_num, item_num, factor_num = 10, 12, 32
    batch = 8
    avg_rating = 3.5

    key = jax.random.PRNGKey(0)
    ks = jax.random.split(key, 12)

    params = {
        "embed_user": 0.01 * jax.random.normal(ks[0], (user_num, factor_num), jnp.float32),
        "embed_item": 0.01 * jax.random.normal(ks[1], (item_num, factor_num), jnp.float32),
        "user_bias": 0.01 * jax.random.normal(ks[2], (user_num, 1), jnp.float32),
        "item_bias": 0.01 * jax.random.normal(ks[3], (item_num, 1), jnp.float32),
        "w1": 0.5 * jax.random.normal(ks[4], (factor_num, 2 * factor_num), jnp.float32),
        "b1": 0.1 * jax.random.normal(ks[5], (2 * factor_num,), jnp.float32),
        "w2": 0.5 * jax.random.normal(ks[6], (2 * factor_num, factor_num), jnp.float32),
        "b2": 0.1 * jax.random.normal(ks[7], (factor_num,), jnp.float32),
    }

    # Dense stand-ins for the normalized sparse interaction matrices.
    user_item_matrix = (jax.random.uniform(ks[8], (user_num, item_num)) < 0.3
                        ).astype(jnp.float32) / item_num
    item_user_matrix = user_item_matrix.T
    d_i = 1.0 / (jnp.sum(user_item_matrix > 0, axis=1, keepdims=True
                         ).astype(jnp.float32) + 1.0)              # (U, 1)
    d_j = 1.0 / (jnp.sum(user_item_matrix > 0, axis=0, keepdims=True
                         ).T.astype(jnp.float32) + 1.0)            # (I, 1)

    user0 = jax.random.randint(ks[9], (batch,), 0, user_num, jnp.int32)
    item_i0 = jax.random.randint(ks[10], (batch,), 0, item_num, jnp.int32)
    ratings = jax.random.uniform(ks[11], (batch,), jnp.float32, 1.0, 5.0)

    outs = gcn_compositional_forward(params, user_item_matrix, item_user_matrix,
                                     d_i, d_j, avg_rating, user0, item_i0, ratings)
    loss, task_loss = outs[0], outs[1]
    jax.block_until_ready((loss, task_loss))

    # ---------------- plain-JAX reference of the same forward ----------------
    hi = jax.lax.Precision.HIGHEST
    ue, ie = params["embed_user"], params["embed_item"]
    g1u = jax.nn.relu(user_item_matrix @ ie + ue * d_i)
    g1i = jax.nn.relu(item_user_matrix @ ue + ie * d_j)
    g2u = jax.nn.relu(user_item_matrix @ g1i + g1u * d_i)
    g2i = jax.nn.relu(item_user_matrix @ g1u + g1i * d_j)
    gu = ue + g1u + g2u
    gi = ie + g1i + g2i

    def filt(x):
        hh = jnp.dot(x, params["w1"], precision=hi) + params["b1"]
        hh = jnp.where(hh > 0, hh, LEAKY_SLOPE * hh)
        yy = jnp.dot(hh, params["w2"], precision=hi) + params["b2"]
        return jnp.where(yy > 0, yy, LEAKY_SLOPE * yy)

    fu_r = filt(gu)[user0]
    fi_r = filt(gi)[item_i0]
    pred_r = ((fu_r * fi_r).sum(-1) + params["user_bias"][user0, 0]
              + params["item_bias"][item_i0, 0] + avg_rating)
    task_r = jnp.mean((pred_r - ratings) ** 2)
    l2_r = LAMADA * jnp.mean(fu_r ** 2) + LAMADA * jnp.mean(fi_r ** 2)
    loss_r = task_r + l2_r

    assert jnp.allclose(task_loss, task_r, rtol=2e-3, atol=1e-5), (task_loss, task_r)
    assert jnp.allclose(loss, loss_r, rtol=2e-3, atol=1e-5), (loss, loss_r)

    print("KERNEL_OK")
</pallas_src>

<mosaic_0001>
module attributes {stable_mosaic.version = 11 : i64} {
  func.func @_filter_kernel_t(%arg0: i32, %arg1: memref<32x22xf32, #tpu.memory_space<vmem>>, %arg2: memref<64x32xf32, #tpu.memory_space<vmem>>, %arg3: memref<64x1xf32, #tpu.memory_space<vmem>>, %arg4: memref<32x64xf32, #tpu.memory_space<vmem>>, %arg5: memref<32x1xf32, #tpu.memory_space<vmem>>, %arg6: memref<32x22xf32, #tpu.memory_space<vmem>>) attributes {dimension_semantics = [#tpu.dimension_semantics<parallel>], iteration_bounds = array<i64: 1>, scalar_prefetch = 0 : i64, scratch_operands = 0 : i64, tpu.core_type = #tpu.core_type<tc>, window_params = [{transform_indices = @transform_0, window_bounds = array<i64: 32, 22>}, {pipeline_mode = #tpu.pipeline_mode<synchronous>, transform_indices = @transform_1, window_bounds = array<i64: 64, 32>}, {pipeline_mode = #tpu.pipeline_mode<synchronous>, transform_indices = @transform_2, window_bounds = array<i64: 64, 1>}, {pipeline_mode = #tpu.pipeline_mode<synchronous>, transform_indices = @transform_3, window_bounds = array<i64: 32, 64>}, {pipeline_mode = #tpu.pipeline_mode<synchronous>, transform_indices = @transform_4, window_bounds = array<i64: 32, 1>}, {transform_indices = @transform_5, window_bounds = array<i64: 32, 22>}]} {
    %c0 = arith.constant 0 : index
    %c0_0 = arith.constant 0 : index
    %0 = vector.load %arg1[%c0, %c0_0] : memref<32x22xf32, #tpu.memory_space<vmem>>, vector<32x22xf32>
    %c0_1 = arith.constant 0 : index
    %c0_2 = arith.constant 0 : index
    %1 = vector.load %arg2[%c0_1, %c0_2] : memref<64x32xf32, #tpu.memory_space<vmem>>, vector<64x32xf32>
    %cst = arith.constant dense<0.000000e+00> : vector<64x22xf32>
    %2 = tpu.matmul %1, %0, %cst {dimension_numbers = #tpu.dot_dimension_numbers<[1], [0], [0], [1], [0, 0, 1, 1], [], []>} : vector<64x32xf32>, vector<32x22xf32>, vector<64x22xf32> -> vector<64x22xf32>
    %c0_3 = arith.constant 0 : index
    %c0_4 = arith.constant 0 : index
    %3 = vector.load %arg3[%c0_3, %c0_4] : memref<64x1xf32, #tpu.memory_space<vmem>>, vector<64x1xf32>
    %4 = vector.broadcast %3 : vector<64x1xf32> to vector<64x22xf32>
    %5 = arith.addf %2, %4 : vector<64x22xf32>
    %cst_5 = arith.constant 0.000000e+00 : f32
    %6 = vector.broadcast %cst_5 : f32 to vector<64x22xf32>
    %7 = arith.cmpf ogt, %5, %6 : vector<64x22xf32>
    %cst_6 = arith.constant 1.000000e-01 : f32
    %8 = vector.broadcast %cst_6 : f32 to vector<64x22xf32>
    %9 = arith.mulf %8, %5 : vector<64x22xf32>
    %10 = arith.select %7, %5, %9 : vector<64x22xi1>, vector<64x22xf32>
    %c0_7 = arith.constant 0 : index
    %c0_8 = arith.constant 0 : index
    %11 = vector.load %arg4[%c0_7, %c0_8] : memref<32x64xf32, #tpu.memory_space<vmem>>, vector<32x64xf32>
    %cst_9 = arith.constant dense<0.000000e+00> : vector<32x22xf32>
    %12 = tpu.matmul %11, %10, %cst_9 {dimension_numbers = #tpu.dot_dimension_numbers<[1], [0], [0], [1], [0, 0, 1, 1], [], []>} : vector<32x64xf32>, vector<64x22xf32>, vector<32x22xf32> -> vector<32x22xf32>
    %c0_10 = arith.constant 0 : index
    %c0_11 = arith.constant 0 : index
    %13 = vector.load %arg5[%c0_10, %c0_11] : memref<32x1xf32, #tpu.memory_space<vmem>>, vector<32x1xf32>
    %14 = vector.broadcast %13 : vector<32x1xf32> to vector<32x22xf32>
    %15 = arith.addf %12, %14 : vector<32x22xf32>
    %cst_12 = arith.constant 0.000000e+00 : f32
    %16 = vector.broadcast %cst_12 : f32 to vector<32x22xf32>
    %17 = arith.cmpf ogt, %15, %16 : vector<32x22xf32>
    %cst_13 = arith.constant 1.000000e-01 : f32
    %18 = vector.broadcast %cst_13 : f32 to vector<32x22xf32>
    %19 = arith.mulf %18, %15 : vector<32x22xf32>
    %20 = arith.select %17, %15, %19 : vector<32x22xi1>, vector<32x22xf32>
    %c0_14 = arith.constant 0 : index
    %c0_15 = arith.constant 0 : index
    %21 = vector.load %arg6[%c0_14, %c0_15] : memref<32x22xf32, #tpu.memory_space<vmem>>, vector<32x22xf32>
    tpu.vector_store %arg6[%c0_14, %c0_15], %20 {strides = array<i32>} : memref<32x22xf32, #tpu.memory_space<vmem>>, vector<32x22xf32>,
    return
  }
  func.func @transform_0(%arg0: i32) -> (i32, i32) {
    %c0_i32 = arith.constant 0 : i32
    %c0_i32_0 = arith.constant 0 : i32
    return %c0_i32, %arg0 : i32, i32
  }
  func.func @transform_1(%arg0: i32) -> (i32, i32) {
    %c0_i32 = arith.constant 0 : i32
    %c0_i32_0 = arith.constant 0 : i32
    %c0_i32_1 = arith.constant 0 : i32
    return %c0_i32, %c0_i32_0 : i32, i32
  }
  func.func @transform_2(%arg0: i32) -> (i32, i32) {
    %c0_i32 = arith.constant 0 : i32
    %c0_i32_0 = arith.constant 0 : i32
    %c0_i32_1 = arith.constant 0 : i32
    return %c0_i32, %c0_i32_0 : i32, i32
  }
  func.func @transform_3(%arg0: i32) -> (i32, i32) {
    %c0_i32 = arith.constant 0 : i32
    %c0_i32_0 = arith.constant 0 : i32
    %c0_i32_1 = arith.constant 0 : i32
    return %c0_i32, %c0_i32_0 : i32, i32
  }
  func.func @transform_4(%arg0: i32) -> (i32, i32) {
    %c0_i32 = arith.constant 0 : i32
    %c0_i32_0 = arith.constant 0 : i32
    %c0_i32_1 = arith.constant 0 : i32
    return %c0_i32, %c0_i32_0 : i32, i32
  }
  func.func @transform_5(%arg0: i32) -> (i32, i32) {
    %c0_i32 = arith.constant 0 : i32
    %c0_i32_0 = arith.constant 0 : i32
    return %c0_i32, %arg0 : i32, i32
  }
}

</mosaic_0001>

<llo_original>
// kernel: tpu_custom_call.1
$region0: #{tpu_custom_call.1}
  #allocation0 [shape = 'u32[]', space=smem, size = 0x4, offset = 0x4, fixed_abs, tag = 'smem constant byte address 0x4 - core index']
  #allocation1 [shape = 'u32[144,128]{1,0:T(1,128)}', space=vmem, size = 0x12000, scoped, tag = 'internal scratch']
  %s0 = inlined_call_operand.vmem [shape: f32[32,22], index: 0, kind: input, shape index: {}]
  %s1 = inlined_call_operand.vmem [shape: f32[64,32], index: 1, kind: input, shape index: {}]
  %s2 = inlined_call_operand.vmem [shape: f32[64,1], index: 2, kind: input, shape index: {}]
  %s3 = inlined_call_operand.vmem [shape: f32[32,64], index: 3, kind: input, shape index: {}]
  %s4 = inlined_call_operand.vmem [shape: f32[32,1], index: 4, kind: input, shape index: {}]
  %s5 = inlined_call_operand.vmem [shape: f32[32,22], index: 5, kind: output, shape index: {}]
  %s6 = sld [smem:[#allocation0]]
  $region30: #{tpu_custom_call.1} parent=0
    _
  %s8 = ssub.s32 1, %s6
  %s9 = scalar_select 0, %s8, %s6
  // Predicated region
  $region2: #{tpu_custom_call.1} parent=0 // pred_check
    _
  $region3: #{tpu_custom_call.1} parent=0 // pred_check_branch
    %11 = sbr.rel (0) target = $region5
  $region4: #{tpu_custom_call.1} parent=0 // pred_region
    _
  $region5: #{tpu_custom_call.1} parent=0 // pred_fallthru
    _
  // Predicated region
  $region6: #{tpu_custom_call.1} parent=0 // pred_check
    _
  $region7: #{tpu_custom_call.1} parent=0 // pred_check_branch
    %13 = sbr.rel (0) target = $region9
  $region8: #{tpu_custom_call.1} parent=0 // pred_region
    _
  $region9: #{tpu_custom_call.1} parent=0 // pred_fallthru
    _
  // Predicated region
  $region10: #{tpu_custom_call.1} parent=0 // pred_check
    _
  $region11: #{tpu_custom_call.1} parent=0 // pred_check_branch
    %15 = sbr.rel (0) target = $region13
  $region12: #{tpu_custom_call.1} parent=0 // pred_region
    _
  $region13: #{tpu_custom_call.1} parent=0 // pred_fallthru
    _
  // Predicated region
  $region14: #{tpu_custom_call.1} parent=0 // pred_check
    _
  $region15: #{tpu_custom_call.1} parent=0 // pred_check_branch
    %17 = sbr.rel (0) target = $region17
  $region16: #{tpu_custom_call.1} parent=0 // pred_region
    _
  $region17: #{tpu_custom_call.1} parent=0 // pred_fallthru
    _
  // Predicated region
  $region18: #{tpu_custom_call.1} parent=0 // pred_check
    _
  $region19: #{tpu_custom_call.1} parent=0 // pred_check_branch
    %19 = sbr.rel (0) target = $region21
  $region20: #{tpu_custom_call.1} parent=0 // pred_region
    _
  $region21: #{tpu_custom_call.1} parent=0 // pred_fallthru
    _
  %v20 = vld [vmem:[%s0] sm:$0xff]
  %v21 = vld [vmem:[%s0 + $0x8] sm:$0xff]
  %v22 = vld [vmem:[%s0 + $0x10] sm:$0xff]
  %v23 = vld [vmem:[%s0 + $0x18] sm:$0xff]
  %v24 = vld [vmem:[%s1] sm:$0xff]
  %v25 = vld [vmem:[%s1 + $0x8] sm:$0xff]
  %v26 = vld [vmem:[%s1 + $0x10] sm:$0xff]
  %v27 = vld [vmem:[%s1 + $0x18] sm:$0xff]
  %v28 = vld [vmem:[%s1 + $0x20] sm:$0xff]
  %v29 = vld [vmem:[%s1 + $0x28] sm:$0xff]
  %v30 = vld [vmem:[%s1 + $0x30] sm:$0xff]
  %v31 = vld [vmem:[%s1 + $0x38] sm:$0xff]
  %v32 = vld [vmem:[%s2] sm:$0xff]
  %v33 = vld [vmem:[%s2 + $0x8] sm:$0xff]
  %v34 = vld [vmem:[%s2 + $0x10] sm:$0xff]
  %v35 = vld [vmem:[%s2 + $0x18] sm:$0xff]
  %v36 = vld [vmem:[%s2 + $0x20] sm:$0xff]
  %v37 = vld [vmem:[%s2 + $0x28] sm:$0xff]
  %v38 = vld [vmem:[%s2 + $0x30] sm:$0xff]
  %v39 = vld [vmem:[%s2 + $0x38] sm:$0xff]
  %41 = vset.pattern.permute.xlu0 0
  %42 = vperm.xlu0 %41, %v32
  %v43 = vpop.permute.xlu0 %42
  %46 = vset.pattern.permute.xlu0 0
  %47 = vperm.xlu0 %46, %v33
  %v48 = vpop.permute.xlu0 %47
  %51 = vset.pattern.permute.xlu0 0
  %52 = vperm.xlu0 %51, %v34
  %v53 = vpop.permute.xlu0 %52
  %56 = vset.pattern.permute.xlu0 0
  %57 = vperm.xlu0 %56, %v35
  %v58 = vpop.permute.xlu0 %57
  %61 = vset.pattern.permute.xlu0 0
  %62 = vperm.xlu0 %61, %v36
  %v63 = vpop.permute.xlu0 %62
  %66 = vset.pattern.permute.xlu0 0
  %67 = vperm.xlu0 %66, %v37
  %v68 = vpop.permute.xlu0 %67
  %71 = vset.pattern.permute.xlu0 0
  %72 = vperm.xlu0 %71, %v38
  %v73 = vpop.permute.xlu0 %72
  %76 = vset.pattern.permute.xlu0 0
  %77 = vperm.xlu0 %76, %v39
  %v78 = vpop.permute.xlu0 %77
  %vm80 = vcmask 261120
  %v82 = vsel %vm80, %v24, 0
  %v85 = vsel %vm80, %v25, 0
  %v88 = vsel %vm80, %v26, 0
  %v91 = vsel %vm80, %v27, 0
  %v94 = vsel %vm80, %v28, 0
  %v97 = vsel %vm80, %v29, 0
  %v100 = vsel %vm80, %v30, 0
  %v103 = vsel %vm80, %v31, 0
  %105 = vmatprep.subr.mxu0 0.0
  %106 = vmatpush1.msra.mxu0 %v20
  %107 = vmatprep.subr.mxu0 0.0
  %108 = vmatpush1.msra.mxu0 %v21
  %109 = vmatprep.subr.mxu0 0.0
  %110 = vmatpush1.msra.mxu0 %v22
  %111 = vmatprep.subr.mxu0 0.0
  %112 = vmatpush1.msra.mxu0 %v23
  %113 = vmatprep.subr.mxu0 0.0
  %114 = vmatpush1.msra.mxu0 0.0
  %115 = vmatprep.subr.mxu0 0.0
  %116 = vmatpush1.msra.mxu0 0.0
  %117 = vmatprep.subr.mxu0 0.0
  %118 = vmatpush1.msra.mxu0 0.0
  %119 = vmatprep.subr.mxu0 0.0
  %120 = vmatpush1.msra.mxu0 0.0
  %121 = vmatprep.subr.mxu0 0.0
  %122 = vmatpush1.msra.mxu0 0.0
  %123 = vmatprep.subr.mxu0 0.0
  %124 = vmatpush1.msra.mxu0 0.0
  %125 = vmatprep.subr.mxu0 0.0
  %126 = vmatpush1.msra.mxu0 0.0
  %127 = vmatprep.subr.mxu0 0.0
  %128 = vmatpush1.msra.mxu0 0.0
  %129 = vmatprep.subr.mxu0 0.0
  %130 = vmatpush1.msra.mxu0 0.0
  %131 = vmatprep.subr.mxu0 0.0
  %132 = vmatpush1.msra.mxu0 0.0
  %133 = vmatprep.subr.mxu0 0.0
  %134 = vmatpush1.msra.mxu0 0.0
  %135 = vmatprep.subr.mxu0 0.0
  %136 = vmatpush1.msra.mxu0 0.0
  %137 = vmatprep.subr.mxu0 0.0
  %138 = vmatpush1.msra.mxu0 0.0
  %139 = vmatprep.subr.mxu0 0.0
  %140 = vmatpush1.msra.mxu0 0.0
  %141 = vmatprep.subr.mxu0 0.0
  %142 = vmatpush1.msra.mxu0 0.0
  %143 = vmatprep.subr.mxu0 0.0
  %144 = vmatpush1.msra.mxu0 0.0
  %145 = vmatprep.subr.mxu0 0.0
  %146 = vmatpush1.msra.mxu0 0.0
  %147 = vmatprep.subr.mxu0 0.0
  %148 = vmatpush1.msra.mxu0 0.0
  %149 = vmatprep.subr.mxu0 0.0
  %150 = vmatpush1.msra.mxu0 0.0
  %151 = vmatprep.subr.mxu0 0.0
  %152 = vmatpush1.msra.mxu0 0.0
  %153 = vmatprep.subr.mxu0 0.0
  %154 = vmatpush1.msra.mxu0 0.0
  %155 = vmatprep.subr.mxu0 0.0
  %156 = vmatpush1.msra.mxu0 0.0
  %157 = vmatprep.subr.mxu0 0.0
  %158 = vmatpush1.msra.mxu0 0.0
  %159 = vmatprep.subr.mxu0 0.0
  %160 = vmatpush1.msra.mxu0 0.0
  %161 = vmatprep.subr.mxu0 0.0
  %162 = vmatpush1.msra.mxu0 0.0
  %163 = vmatprep.subr.mxu0 0.0
  %164 = vmatpush1.msra.mxu0 0.0
  %165 = vmatprep.subr.mxu0 0.0
  %166 = vmatpush1.msra.mxu0 0.0
  %167 = vmatprep.subr.mxu0 0.0
  %168 = vmatpush1.msra.mxu0 0.0
  %169 = vmatprep.mubr.f32.mxu0 0.0
  %170 = vmatmul.mubr.f32.gmra.mrb[0].mxu0 %v82
  %v171 = vpop.f32.mrb[0].mxu0
  %v172 = vadd.f32 %v43, %v171
  %v173 = vpop.f32.mrb[0].mxu0
  %174 = vmatprep.mubr.f32.mxu0 0.0
  %175 = vmatmul.mubr.f32.gmra.mrb[0].mxu0 %v85
  %v176 = vpop.f32.mrb[0].mxu0
  %v177 = vadd.f32 %v48, %v176
  %v178 = vpop.f32.mrb[0].mxu0
  %179 = vmatprep.mubr.f32.mxu0 0.0
  %180 = vmatmul.mubr.f32.gmra.mrb[0].mxu0 %v88
  %v181 = vpop.f32.mrb[0].mxu0
  %v182 = vadd.f32 %v53, %v181
  %v183 = vpop.f32.mrb[0].mxu0
  %184 = vmatprep.mubr.f32.mxu0 0.0
  %185 = vmatmul.mubr.f32.gmra.mrb[0].mxu0 %v91
  %v186 = vpop.f32.mrb[0].mxu0
  %v187 = vadd.f32 %v58, %v186
  %v188 = vpop.f32.mrb[0].mxu0
  %189 = vmatprep.mubr.f32.mxu0 0.0
  %190 = vmatmul.mubr.f32.gmra.mrb[0].mxu0 %v94
  %v191 = vpop.f32.mrb[0].mxu0
  %v192 = vadd.f32 %v63, %v191
  %v193 = vpop.f32.mrb[0].mxu0
  %194 = vmatprep.mubr.f32.mxu0 0.0
  %195 = vmatmul.mubr.f32.gmra.mrb[0].mxu0 %v97
  %v196 = vpop.f32.mrb[0].mxu0
  %v197 = vadd.f32 %v68, %v196
  %v198 = vpop.f32.mrb[0].mxu0
  %199 = vmatprep.mubr.f32.mxu0 0.0
  %200 = vmatmul.mubr.f32.gmra.mrb[0].mxu0 %v100
  %v201 = vpop.f32.mrb[0].mxu0
  %v202 = vadd.f32 %v73, %v201
  %v203 = vpop.f32.mrb[0].mxu0
  %204 = vmatprep.mubr.f32.mxu0 0.0
  %205 = vmatmul.mubr.f32.gmra.mrb[0].mxu0 %v103
  %v206 = vpop.f32.mrb[0].mxu0
  %v207 = vadd.f32 %v78, %v206
  %v208 = vpop.f32.mrb[0].mxu0
  %209 = vdwg.mxu0
  %vm210 = vcmp.gt.f32.partialorder %v172, 0.0
  %vm211 = vcmp.gt.f32.partialorder %v177, 0.0
  %vm212 = vcmp.gt.f32.partialorder %v182, 0.0
  %vm213 = vcmp.gt.f32.partialorder %v187, 0.0
  %vm214 = vcmp.gt.f32.partialorder %v192, 0.0
  %vm215 = vcmp.gt.f32.partialorder %v197, 0.0
  %vm216 = vcmp.gt.f32.partialorder %v202, 0.0
  %vm217 = vcmp.gt.f32.partialorder %v207, 0.0
  %v218 = vmul.f32 %v172, 0.1
  %v219 = vmul.f32 %v177, 0.1
  %v220 = vmul.f32 %v182, 0.1
  %v221 = vmul.f32 %v187, 0.1
  %v222 = vmul.f32 %v192, 0.1
  %v223 = vmul.f32 %v197, 0.1
  %v224 = vmul.f32 %v202, 0.1
  %v225 = vmul.f32 %v207, 0.1
  %v226 = vsel %vm210, %v172, %v218
  %v227 = vsel %vm211, %v177, %v219
  %v228 = vsel %vm212, %v182, %v220
  %v229 = vsel %vm213, %v187, %v221
  %v230 = vsel %vm214, %v192, %v222
  %v231 = vsel %vm215, %v197, %v223
  %v232 = vsel %vm216, %v202, %v224
  %v233 = vsel %vm217, %v207, %v225
  %v234 = vld [vmem:[%s3] sm:$0xff]
  %v235 = vld [vmem:[%s3 + $0x8] sm:$0xff]
  %v236 = vld [vmem:[%s3 + $0x10] sm:$0xff]
  %v237 = vld [vmem:[%s3 + $0x18] sm:$0xff]
  %v238 = vld [vmem:[%s4] sm:$0xff]
  %v239 = vld [vmem:[%s4 + $0x8] sm:$0xff]
  %v240 = vld [vmem:[%s4 + $0x10] sm:$0xff]
  %v241 = vld [vmem:[%s4 + $0x18] sm:$0xff]
  %243 = vset.pattern.permute.xlu0 0
  %244 = vperm.xlu0 %243, %v238
  %v245 = vpop.permute.xlu0 %244
  %248 = vset.pattern.permute.xlu0 0
  %249 = vperm.xlu0 %248, %v239
  %v250 = vpop.permute.xlu0 %249
  %253 = vset.pattern.permute.xlu0 0
  %254 = vperm.xlu0 %253, %v240
  %v255 = vpop.permute.xlu0 %254
  %258 = vset.pattern.permute.xlu0 0
  %259 = vperm.xlu0 %258, %v241
  %v260 = vpop.permute.xlu0 %259
  %vm262 = vcmask 523264
  %v264 = vsel %vm262, %v234, 0
  %v267 = vsel %vm262, %v235, 0
  %v270 = vsel %vm262, %v236, 0
  %v273 = vsel %vm262, %v237, 0
  %275 = vmatprep.subr.mxu0 0.0
  %276 = vmatpush1.msra.mxu0 %v226
  %277 = vmatprep.subr.mxu0 0.0
  %278 = vmatpush1.msra.mxu0 %v227
  %279 = vmatprep.subr.mxu0 0.0
  %280 = vmatpush1.msra.mxu0 %v228
  %281 = vmatprep.subr.mxu0 0.0
  %282 = vmatpush1.msra.mxu0 %v229
  %283 = vmatprep.subr.mxu0 0.0
  %284 = vmatpush1.msra.mxu0 %v230
  %285 = vmatprep.subr.mxu0 0.0
  %286 = vmatpush1.msra.mxu0 %v231
  %287 = vmatprep.subr.mxu0 0.0
  %288 = vmatpush1.msra.mxu0 %v232
  %289 = vmatprep.subr.mxu0 0.0
  %290 = vmatpush1.msra.mxu0 %v233
  %291 = vmatprep.subr.mxu0 0.0
  %292 = vmatpush1.msra.mxu0 0.0
  %293 = vmatprep.subr.mxu0 0.0
  %294 = vmatpush1.msra.mxu0 0.0
  %295 = vmatprep.subr.mxu0 0.0
  %296 = vmatpush1.msra.mxu0 0.0
  %297 = vmatprep.subr.mxu0 0.0
  %298 = vmatpush1.msra.mxu0 0.0
  %299 = vmatprep.subr.mxu0 0.0
  %300 = vmatpush1.msra.mxu0 0.0
  %301 = vmatprep.subr.mxu0 0.0
  %302 = vmatpush1.msra.mxu0 0.0
  %303 = vmatprep.subr.mxu0 0.0
  %304 = vmatpush1.msra.mxu0 0.0
  %305 = vmatprep.subr.mxu0 0.0
  %306 = vmatpush1.msra.mxu0 0.0
  %307 = vmatprep.subr.mxu0 0.0
  %308 = vmatpush1.msra.mxu0 0.0
  %309 = vmatprep.subr.mxu0 0.0
  %310 = vmatpush1.msra.mxu0 0.0
  %311 = vmatprep.subr.mxu0 0.0
  %312 = vmatpush1.msra.mxu0 0.0
  %313 = vmatprep.subr.mxu0 0.0
  %314 = vmatpush1.msra.mxu0 0.0
  %315 = vmatprep.subr.mxu0 0.0
  %316 = vmatpush1.msra.mxu0 0.0
  %317 = vmatprep.subr.mxu0 0.0
  %318 = vmatpush1.msra.mxu0 0.0
  %319 = vmatprep.subr.mxu0 0.0
  %320 = vmatpush1.msra.mxu0 0.0
  %321 = vmatprep.subr.mxu0 0.0
  %322 = vmatpush1.msra.mxu0 0.0
  %323 = vmatprep.subr.mxu0 0.0
  %324 = vmatpush1.msra.mxu0 0.0
  %325 = vmatprep.subr.mxu0 0.0
  %326 = vmatpush1.msra.mxu0 0.0
  %327 = vmatprep.subr.mxu0 0.0
  %328 = vmatpush1.msra.mxu0 0.0
  %329 = vmatprep.subr.mxu0 0.0
  %330 = vmatpush1.msra.mxu0 0.0
  %331 = vmatprep.subr.mxu0 0.0
  %332 = vmatpush1.msra.mxu0 0.0
  %333 = vmatprep.subr.mxu0 0.0
  %334 = vmatpush1.msra.mxu0 0.0
  %335 = vmatprep.subr.mxu0 0.0
  %336 = vmatpush1.msra.mxu0 0.0
  %337 = vmatprep.subr.mxu0 0.0
  %338 = vmatpush1.msra.mxu0 0.0
  %339 = vmatprep.mubr.f32.mxu0 0.0
  %340 = vmatmul.mubr.f32.gmra.mrb[0].mxu0 %v264
  %v341 = vpop.f32.mrb[0].mxu0
  %v342 = vadd.f32 %v245, %v341
  %v343 = vpop.f32.mrb[0].mxu0
  %344 = vmatprep.mubr.f32.mxu0 0.0
  %345 = vmatmul.mubr.f32.gmra.mrb[0].mxu0 %v267
  %v346 = vpop.f32.mrb[0].mxu0
  %v347 = vadd.f32 %v250, %v346
  %v348 = vpop.f32.mrb[0].mxu0
  %349 = vmatprep.mubr.f32.mxu0 0.0
  %350 = vmatmul.mubr.f32.gmra.mrb[0].mxu0 %v270
  %v351 = vpop.f32.mrb[0].mxu0
  %v352 = vadd.f32 %v255, %v351
  %v353 = vpop.f32.mrb[0].mxu0
  %354 = vmatprep.mubr.f32.mxu0 0.0
  %355 = vmatmul.mubr.f32.gmra.mrb[0].mxu0 %v273
  %v356 = vpop.f32.mrb[0].mxu0
  %v357 = vadd.f32 %v260, %v356
  %v358 = vpop.f32.mrb[0].mxu0
  %359 = vdwg.mxu0
  %vm360 = vcmp.gt.f32.partialorder %v342, 0.0
  %vm361 = vcmp.gt.f32.partialorder %v347, 0.0
  %vm362 = vcmp.gt.f32.partialorder %v352, 0.0
  %vm363 = vcmp.gt.f32.partialorder %v357, 0.0
  %v364 = vmul.f32 %v342, 0.1
  %v365 = vmul.f32 %v347, 0.1
  %v366 = vmul.f32 %v352, 0.1
  %v367 = vmul.f32 %v357, 0.1
  %v368 = vsel %vm360, %v342, %v364
  %v369 = vsel %vm361, %v347, %v365
  %v370 = vsel %vm362, %v352, %v366
  %v371 = vsel %vm363, %v357, %v367
  %vm372 = vcmask 179200
  %373 = vst.msk [vmem:[%s5] sm:$0xff] %vm372, %v368
  %374 = vst.msk [vmem:[%s5 + $0x8] sm:$0xff] %vm372, %v369
  %375 = vst.msk [vmem:[%s5 + $0x10] sm:$0xff] %vm372, %v370
  %376 = vst.msk [vmem:[%s5 + $0x18] sm:$0xff] %vm372, %v371
  // Predicated region
  $region22: #{tpu_custom_call.1} parent=0 // pred_check
    _
  $region23: #{tpu_custom_call.1} parent=0 // pred_check_branch
    %378 = sbr.rel (0) target = $region25
  $region24: #{tpu_custom_call.1} parent=0 // pred_region
    _
  $region25: #{tpu_custom_call.1} parent=0 // pred_fallthru
    _
  // Predicated region
  $region26: #{tpu_custom_call.1} parent=0 // pred_check
    _
  $region27: #{tpu_custom_call.1} parent=0 // pred_check_branch
    %380 = sbr.rel (0) target = $region29
  $region28: #{tpu_custom_call.1} parent=0 // pred_region
    _
  $region29: #{tpu_custom_call.1} parent=0 // pred_fallthru
    _

</llo_original>
